<compile_context>
chip_gen: v7x
topology: tpu7x:2x2x1
jax: 0.10.0
libtpu: 0.0.40
codegen_flags: <defaults>
</compile_context>

<pallas_src>
import functools

import jax
import jax.numpy as jnp
from jax.experimental import pallas as pl
from jax.experimental.pallas import tpu as pltpu

HID = 64     # hidden_nums[0]; hidden_nums[1] == 1
HIDP = 128   # one vreg lane row


def _round_up(x, m):
    return ((x + m - 1) // m) * m


# ---------------------------------------------------------------------------
# Kernel
# ---------------------------------------------------------------------------
def qmix_mixing_kernel(x_ref, q_ref, wf_ref, bf_ref, out_ref, *, num_agent):
    # Single fused hyper-network matmul on the MXU, f32 accumulation.
    # Activation tile is cast to the packed-weight dtype here (in VMEM), not
    # in the wrapper (no extra HBM pass).
    x = x_ref[...].astype(wf_ref.dtype)
    h = jnp.dot(x, wf_ref[...], preferred_element_type=jnp.float32)
    h = h + bf_ref[...]                                    # (TB, F) f32

    q = q_ref[...].astype(jnp.float32)                     # (TB, N)
    n_pair = (num_agent + 1) // 2
    off_w2 = n_pair * HIDP                                 # W2 segment
    off_b = off_w2 + HIDP                                  # [b2 | 0 | b1] segment

    lane = jax.lax.broadcasted_iota(jnp.int32, (1, HIDP), 1)
    low = lane < HID                                       # lower / upper 64-lane half

    # sum_n q_n * |W1_n|, two agents per 128-lane segment:
    #   lanes 0-63 accumulate even agents, lanes 64-127 accumulate odd agents.
    acc = None
    for k in range(n_pair):
        a_lo = 2 * k
        a_hi = min(2 * k + 1, num_agent - 1)   # odd N: upper-half weights are 0
        scale = jnp.where(low, q[:, a_lo:a_lo + 1], q[:, a_hi:a_hi + 1])
        term = scale * jnp.abs(h[:, k * HIDP:(k + 1) * HIDP])
        acc = term if acc is None else acc + term

    # Fold the even/odd halves with one XLU rotate, then add b1 (upper half of
    # the bias segment).  The b2 value (lane 0) never reaches the reduction
    # because the |W2| multiplier below is explicitly zero on the lower half.
    hidden = acc + pltpu.roll(acc, HID, 1)
    hidden = hidden + h[:, off_b:off_b + HIDP]             # [b2 | 0 | b1]

    hw2 = jnp.where(low, 0.0, jnp.abs(h[:, off_w2:off_w2 + HIDP]))

    b2 = h[:, off_b:off_b + 1]                             # (TB, 1), 128-aligned slice
    q_tot = jnp.sum(hidden * hw2, axis=-1, keepdims=True) + b2   # (TB, 1)

    # Lane-dense output row: one tiny (TB,1)->(1,TB) relayout per tile.
    tb = q_tot.shape[0]
    out_ref[...] = q_tot.reshape(1, 1, tb).astype(out_ref.dtype)


# ---------------------------------------------------------------------------
# Parameter construction / packing (pack ONCE, outside the per-step path)
# ---------------------------------------------------------------------------
def init_linear(key, in_f, out_f):
    """Deterministic nn.Linear-style init; weight stored as (in_f, out_f)."""
    kw, kb = jax.random.split(key)
    bound = 1.0 / jnp.sqrt(in_f)
    w = jax.random.uniform(kw, (in_f, out_f), jnp.float32, -bound, bound)
    b = jax.random.uniform(kb, (1, out_f), jnp.float32, -bound, bound)
    return w, b


def make_qmix_mixing_params(key, num_agent, joint_obs_size):
    k1, k2, k3, k4 = jax.random.split(key, 4)
    w1, bw1 = init_linear(k1, joint_obs_size, num_agent * HID)  # hyper_netw1
    w2, bw2 = init_linear(k2, joint_obs_size, HID * 1)          # hyper_netw2
    wb1, bb1 = init_linear(k3, joint_obs_size, HID)             # hyper_netb1
    wb2, bb2 = init_linear(k4, joint_obs_size, 1)               # hyper_netb2
    return dict(w1=w1, bw1=bw1, w2=w2, bw2=bw2,
                wb1=wb1, bb1=bb1, wb2=wb2, bb2=bb2)
# TODO(synk): QMIXAgent_net (fc1 -> GRU -> fc2) agent heads / get_action are
# not part of the mixing forward hot path; only the mixing forward is here.


def pack_qmix_params(params, num_agent, compute_dtype=jnp.bfloat16):
    """Pack the 4 hyper-net linears into one (J, F) weight + (1, F) f32 bias.

    F = (ceil(N/2) + 2) * 128.  128-lane segment layout (padding exactly zero):
      seg k < ceil(N/2) : [ W1_{2k} (64) | W1_{2k+1} (64) ]   (abs in kernel)
      seg ceil(N/2)     : [ 0 (64)       | W2 (64)        ]   (abs in kernel)
      seg ceil(N/2)+1   : [ Wb2, 0 (63)  | Wb1 (64)       ]   (no abs)
    Call this ONCE per parameter set / dtype and reuse the result every step.
    """
    w1, bw1 = params["w1"], params["bw1"]
    w2, bw2 = params["w2"], params["bw2"]
    wb1, bb1 = params["wb1"], params["bb1"]
    wb2, bb2 = params["wb2"], params["bb2"]
    J = w1.shape[0]
    n_pair = (num_agent + 1) // 2

    def zw(c): return jnp.zeros((J, c), jnp.float32)
    def zb(c): return jnp.zeros((1, c), jnp.float32)

    w_segs, b_segs = [], []
    for k in range(n_pair):
        lo = w1[:, (2 * k) * HID:(2 * k + 1) * HID]
        lob = bw1[:, (2 * k) * HID:(2 * k + 1) * HID]
        if 2 * k + 1 < num_agent:
            hi = w1[:, (2 * k + 1) * HID:(2 * k + 2) * HID]
            hib = bw1[:, (2 * k + 1) * HID:(2 * k + 2) * HID]
        else:
            hi, hib = zw(HID), zb(HID)
        w_segs += [lo, hi]
        b_segs += [lob, hib]
    w_segs += [zw(HID), w2]                    # W2 segment (upper half)
    b_segs += [zb(HID), bw2]
    w_segs += [wb2, zw(HID - 1), wb1]          # [Wb2 | 0 | Wb1] segment
    b_segs += [bb2, zb(HID - 1), bb1]

    wf = jnp.concatenate(w_segs, axis=1).astype(compute_dtype)   # (J, F)
    bf = jnp.concatenate(b_segs, axis=1).astype(jnp.float32)     # (1, F)
    return wf, bf


# ---------------------------------------------------------------------------
# Tile selection + wrapper
# ---------------------------------------------------------------------------
def _choose_block_rows(batch, block_rows, f_cols, x_itemsize):
    """Largest batch tile fitting a ~10 MiB VMEM budget (v5e 16 MiB default)."""
    per_row = (f_cols * 4                 # h = x @ wf + bf (f32)
               + 3 * HIDP * 4             # acc / hidden / product temporaries
               + 2 * HIDP * x_itemsize    # double-buffered x tile (lane padded)
               + 2 * HIDP * 4             # double-buffered q tile (lane padded)
               + 2 * HIDP                 # in-kernel low-precision copy of x
               + 64)                      # output tile
    budget = 10 * 1024 * 1024
    tb = min(block_rows, max(8, budget // per_row))
    tb = max(8, (tb // 8) * 8)
    if batch >= 1024:                     # v7x: >=2 grid steps -> both TensorCores
        tb = min(tb, _round_up(pl.cdiv(batch, 2), 8))
    tb = min(tb, _round_up(batch, 8))
    if tb >= 256:                         # keep big tiles 128-lane aligned
        tb = (tb // 128) * 128
    return tb


@functools.partial(jax.jit, static_argnames=("num_agent", "block_rows"))
def qmix_mixing_forward(q_vals, inputs, wf, bf, *, num_agent, block_rows=2048):
    """q_vals: (B,N) or (B*N,); inputs: (B,J) in its NATIVE dtype (cast happens
    in-kernel); (wf, bf) from pack_qmix_params() (packed once).  -> (B,1,1) f32.
    """
    B, J = inputs.shape
    F = wf.shape[1]
    assert F == ((num_agent + 1) // 2 + 2) * HIDP, "wf not packed for this N"
    q = q_vals.reshape(B, num_agent).astype(jnp.float32)

    TB = _choose_block_rows(B, block_rows, F, jnp.dtype(inputs.dtype).itemsize)
    nt = pl.cdiv(B, TB)

    kernel = functools.partial(qmix_mixing_kernel, num_agent=num_agent)
    cost = pl.CostEstimate(
        flops=2 * B * J * F + 16 * B * HIDP,
        transcendentals=0,
        bytes_accessed=(B * J * jnp.dtype(inputs.dtype).itemsize
                        + B * num_agent * 4
                        + (J + 1) * F * jnp.dtype(wf.dtype).itemsize
                        + B * 4),
    )

    out = pl.pallas_call(
        kernel,
        out_shape=jax.ShapeDtypeStruct((nt, 1, TB), jnp.float32),
        grid=(nt,),
        in_specs=[
            pl.BlockSpec((TB, J), lambda i: (i, 0)),           # activations (streamed)
            pl.BlockSpec((TB, num_agent), lambda i: (i, 0)),   # per-agent q (streamed)
            pl.BlockSpec((J, F), lambda i: (0, 0)),            # packed weights (resident)
            pl.BlockSpec((1, F), lambda i: (0, 0)),            # packed biases (resident)
        ],
        out_specs=pl.BlockSpec((1, 1, TB), lambda i: (i, 0, 0)),
        compiler_params=pltpu.CompilerParams(
            dimension_semantics=("parallel",)),
        cost_estimate=cost,
    )(inputs, q, wf, bf)

    # Last partial tile may contain garbage rows (reads past B) -> sliced off.
    return out.reshape(nt * TB)[:B].reshape(B, 1, 1)


# ---------------------------------------------------------------------------
# Pure-JAX reference (mirrors the PyTorch module in f32)
# ---------------------------------------------------------------------------
def qmix_mixing_reference(q_vals, inputs, params, num_agent):
    B = inputs.shape[0]
    w1 = jnp.abs(inputs @ params["w1"] + params["bw1"]).reshape(B, num_agent, HID)
    w2 = jnp.abs(inputs @ params["w2"] + params["bw2"]).reshape(B, HID, 1)
    b1 = (inputs @ params["wb1"] + params["bb1"]).reshape(B, 1, HID)
    b2 = (inputs @ params["wb2"] + params["bb2"]).reshape(B, 1, 1)
    q = q_vals.reshape(B, 1, num_agent)
    return jnp.matmul(jnp.matmul(q, w1) + b1, w2) + b2


if __name__ == "__main__":
    num_agent = 4
    joint_obs_size = 32

    key = jax.random.PRNGKey(0)
    kp, kq, kx = jax.random.split(key, 3)
    params = make_qmix_mixing_params(kp, num_agent, joint_obs_size)

    # Pack ONCE per dtype (hoisted out of the per-step path).
    packed_f32 = pack_qmix_params(params, num_agent, jnp.float32)
    packed_bf16 = pack_qmix_params(params, num_agent, jnp.bfloat16)

    # (batch, block_rows): single tile; ragged multi-tile; ragged with larger TB.
    for batch, block_rows in ((8, 2048), (37, 16), (133, 64)):
        kq_b, kx_b = jax.random.split(jax.random.fold_in(kq, batch))
        q_vals = jax.random.normal(kq_b, (batch, num_agent), jnp.float32)
        inputs = jax.random.normal(kx_b, (batch, joint_obs_size), jnp.float32)
        ref = qmix_mixing_reference(q_vals, inputs, params, num_agent)

        # f32 MXU path (training-critical precision).
        out_f32 = qmix_mixing_forward(q_vals, inputs, *packed_f32,
                                      num_agent=num_agent, block_rows=block_rows)
        out_f32 = jax.block_until_ready(out_f32)
        assert out_f32.shape == (batch, 1, 1)
        assert jnp.allclose(out_f32, ref, atol=1e-3, rtol=1e-3), (
            f"f32 mismatch (batch={batch})")

        # bf16 MXU path (halved weight/activation bytes, ~1e-2 rel error).
        out_bf16 = qmix_mixing_forward(q_vals, inputs, *packed_bf16,
                                       num_agent=num_agent, block_rows=block_rows)
        out_bf16 = jax.block_until_ready(out_bf16)
        err = float(jnp.max(jnp.abs(out_bf16 - ref)))
        scale = float(jnp.maximum(jnp.max(jnp.abs(ref)), 1.0))
        assert err / scale < 1e-1, f"bf16 mismatch (batch={batch}): {err}/{scale}"

    print("KERNEL_OK")
</pallas_src>

<mosaic_0001>
module attributes {stable_mosaic.version = 11 : i64} {
  func.func @qmix_mixing_kernel(%arg0: i32, %arg1: memref<8x32xf32, #tpu.memory_space<vmem>>, %arg2: memref<8x4xf32, #tpu.memory_space<vmem>>, %arg3: memref<32x512xf32, #tpu.memory_space<vmem>>, %arg4: memref<1x512xf32, #tpu.memory_space<vmem>>, %arg5: memref<1x1x8xf32, #tpu.memory_space<vmem>>) attributes {dimension_semantics = [#tpu.dimension_semantics<parallel>], iteration_bounds = array<i64: 1>, scalar_prefetch = 0 : i64, scratch_operands = 0 : i64, tpu.core_type = #tpu.core_type<tc>, window_params = [{transform_indices = @transform_0, window_bounds = array<i64: 8, 32>}, {transform_indices = @transform_1, window_bounds = array<i64: 8, 4>}, {pipeline_mode = #tpu.pipeline_mode<synchronous>, transform_indices = @transform_2, window_bounds = array<i64: 32, 512>}, {pipeline_mode = #tpu.pipeline_mode<synchronous>, transform_indices = @transform_3, window_bounds = array<i64: 1, 512>}, {transform_indices = @transform_4, window_bounds = array<i64: 1, 1, 8>}]} {
    %c0 = arith.constant 0 : index
    %c0_0 = arith.constant 0 : index
    %0 = vector.load %arg1[%c0, %c0_0] : memref<8x32xf32, #tpu.memory_space<vmem>>, vector<8x32xf32>
    %c0_1 = arith.constant 0 : index
    %c0_2 = arith.constant 0 : index
    %1 = vector.load %arg3[%c0_1, %c0_2] : memref<32x512xf32, #tpu.memory_space<vmem>>, vector<32x512xf32>
    %cst = arith.constant dense<0.000000e+00> : vector<8x512xf32>
    %2 = tpu.matmul %0, %1, %cst {dimension_numbers = #tpu.dot_dimension_numbers<[1], [0], [0], [1], [0, 0, 1, 1], [], []>} : vector<8x32xf32>, vector<32x512xf32>, vector<8x512xf32> -> vector<8x512xf32>
    %c0_3 = arith.constant 0 : index
    %c0_4 = arith.constant 0 : index
    %3 = vector.load %arg4[%c0_3, %c0_4] : memref<1x512xf32, #tpu.memory_space<vmem>>, vector<1x512xf32>
    %4 = vector.broadcast %3 : vector<1x512xf32> to vector<8x512xf32>
    %5 = arith.addf %2, %4 : vector<8x512xf32>
    %c0_5 = arith.constant 0 : index
    %c0_6 = arith.constant 0 : index
    %6 = vector.load %arg2[%c0_5, %c0_6] : memref<8x4xf32, #tpu.memory_space<vmem>>, vector<8x4xf32>
    %7 = tpu.iota {dimensions = array<i32: 1>} : vector<1x128xi32>
    %c64_i32 = arith.constant 64 : i32
    %8 = vector.broadcast %c64_i32 : i32 to vector<1x128xi32>
    %9 = arith.cmpi slt, %7, %8 : vector<1x128xi32>
    %10 = vector.extract_strided_slice %6 {offsets = [0, 0], sizes = [8, 1], strides = [1, 1]} : vector<8x4xf32> to vector<8x1xf32>
    %11 = vector.extract_strided_slice %6 {offsets = [0, 1], sizes = [8, 1], strides = [1, 1]} : vector<8x4xf32> to vector<8x1xf32>
    %12 = vector.shape_cast %9 : vector<1x128xi1> to vector<1x128xi1>
    %13 = vector.broadcast %12 : vector<1x128xi1> to vector<8x128xi1>
    %14 = vector.shape_cast %10 : vector<8x1xf32> to vector<8x1xf32>
    %15 = vector.broadcast %14 : vector<8x1xf32> to vector<8x128xf32>
    %16 = vector.shape_cast %11 : vector<8x1xf32> to vector<8x1xf32>
    %17 = vector.broadcast %16 : vector<8x1xf32> to vector<8x128xf32>
    %18 = arith.select %13, %15, %17 : vector<8x128xi1>, vector<8x128xf32>
    %19 = vector.extract_strided_slice %5 {offsets = [0, 0], sizes = [8, 128], strides = [1, 1]} : vector<8x512xf32> to vector<8x128xf32>
    %20 = math.absf %19 : vector<8x128xf32>
    %21 = arith.mulf %18, %20 : vector<8x128xf32>
    %22 = vector.extract_strided_slice %6 {offsets = [0, 2], sizes = [8, 1], strides = [1, 1]} : vector<8x4xf32> to vector<8x1xf32>
    %23 = vector.extract_strided_slice %6 {offsets = [0, 3], sizes = [8, 1], strides = [1, 1]} : vector<8x4xf32> to vector<8x1xf32>
    %24 = vector.shape_cast %9 : vector<1x128xi1> to vector<1x128xi1>
    %25 = vector.broadcast %24 : vector<1x128xi1> to vector<8x128xi1>
    %26 = vector.shape_cast %22 : vector<8x1xf32> to vector<8x1xf32>
    %27 = vector.broadcast %26 : vector<8x1xf32> to vector<8x128xf32>
    %28 = vector.shape_cast %23 : vector<8x1xf32> to vector<8x1xf32>
    %29 = vector.broadcast %28 : vector<8x1xf32> to vector<8x128xf32>
    %30 = arith.select %25, %27, %29 : vector<8x128xi1>, vector<8x128xf32>
    %31 = vector.extract_strided_slice %5 {offsets = [0, 128], sizes = [8, 128], strides = [1, 1]} : vector<8x512xf32> to vector<8x128xf32>
    %32 = math.absf %31 : vector<8x128xf32>
    %33 = arith.mulf %30, %32 : vector<8x128xf32>
    %34 = arith.addf %21, %33 : vector<8x128xf32>
    %c64_i32_7 = arith.constant 64 : i32
    %35 = tpu.dynamic_rotate %34 by %c64_i32_7 dim 1 : vector<8x128xf32>, i32 -> vector<8x128xf32>
    %36 = arith.addf %34, %35 : vector<8x128xf32>
    %37 = vector.extract_strided_slice %5 {offsets = [0, 384], sizes = [8, 128], strides = [1, 1]} : vector<8x512xf32> to vector<8x128xf32>
    %38 = arith.addf %36, %37 : vector<8x128xf32>
    %39 = vector.extract_strided_slice %5 {offsets = [0, 256], sizes = [8, 128], strides = [1, 1]} : vector<8x512xf32> to vector<8x128xf32>
    %40 = math.absf %39 : vector<8x128xf32>
    %cst_8 = arith.constant 0.000000e+00 : f32
    %41 = vector.shape_cast %9 : vector<1x128xi1> to vector<1x128xi1>
    %42 = vector.broadcast %41 : vector<1x128xi1> to vector<8x128xi1>
    %43 = vector.broadcast %cst_8 : f32 to vector<8x128xf32>
    %44 = arith.select %42, %43, %40 : vector<8x128xi1>, vector<8x128xf32>
    %45 = vector.extract_strided_slice %5 {offsets = [0, 384], sizes = [8, 1], strides = [1, 1]} : vector<8x512xf32> to vector<8x1xf32>
    %46 = arith.mulf %38, %44 : vector<8x128xf32>
    %cst_9 = arith.constant dense<0.000000e+00> : vector<8xf32>
    %47 = vector.multi_reduction <add>, %46, %cst_9 [1] : vector<8x128xf32> to vector<8xf32>
    %48 = vector.shape_cast %47 : vector<8xf32> to vector<8x1xf32>
    %49 = arith.addf %48, %45 : vector<8x1xf32>
    %50 = vector.shape_cast %49 : vector<8x1xf32> to vector<1x1x8xf32>
    %c0_10 = arith.constant 0 : index
    %c0_11 = arith.constant 0 : index
    %c0_12 = arith.constant 0 : index
    %51 = vector.load %arg5[%c0_10, %c0_11, %c0_12] : memref<1x1x8xf32, #tpu.memory_space<vmem>>, vector<1x1x8xf32>
    tpu.vector_store %arg5[%c0_10, %c0_11, %c0_12], %50 {strides = array<i32>} : memref<1x1x8xf32, #tpu.memory_space<vmem>>, vector<1x1x8xf32>,
    return
  }
  func.func @transform_0(%arg0: i32) -> (i32, i32) {
    %c0_i32 = arith.constant 0 : i32
    %c0_i32_0 = arith.constant 0 : i32
    return %arg0, %c0_i32 : i32, i32
  }
  func.func @transform_1(%arg0: i32) -> (i32, i32) {
    %c0_i32 = arith.constant 0 : i32
    %c0_i32_0 = arith.constant 0 : i32
    return %arg0, %c0_i32 : i32, i32
  }
  func.func @transform_2(%arg0: i32) -> (i32, i32) {
    %c0_i32 = arith.constant 0 : i32
    %c0_i32_0 = arith.constant 0 : i32
    %c0_i32_1 = arith.constant 0 : i32
    return %c0_i32, %c0_i32_0 : i32, i32
  }
  func.func @transform_3(%arg0: i32) -> (i32, i32) {
    %c0_i32 = arith.constant 0 : i32
    %c0_i32_0 = arith.constant 0 : i32
    %c0_i32_1 = arith.constant 0 : i32
    return %c0_i32, %c0_i32_0 : i32, i32
  }
  func.func @transform_4(%arg0: i32) -> (i32, i32, i32) {
    %c0_i32 = arith.constant 0 : i32
    %c0_i32_0 = arith.constant 0 : i32
    %c0_i32_1 = arith.constant 0 : i32
    return %arg0, %c0_i32, %c0_i32_0 : i32, i32, i32
  }
}

</mosaic_0001>

<llo_original>
// kernel: qmix_mixing_forward.1
$region0: #{qmix_mixing_forward.1}
  #allocation0 [shape = 'u32[]', space=smem, size = 0x4, offset = 0x4, fixed_abs, tag = 'smem constant byte address 0x4 - core index']
  #allocation1 [shape = 'u32[144,128]{1,0:T(1,128)}', space=vmem, size = 0x12000, scoped, tag = 'internal scratch']
  %s0 = inlined_call_operand.vmem [shape: f32[8,32], index: 0, kind: input, shape index: {}]
  %s1 = inlined_call_operand.vmem [shape: f32[8,4], index: 1, kind: input, shape index: {}]
  %s2 = inlined_call_operand.hbm [shape: f32[32,512], index: 2, kind: input, shape index: {}]
  %s3 = inlined_call_operand.vmem [shape: f32[1,512], index: 3, kind: input, shape index: {}]
  %s4 = inlined_call_operand.hbm [shape: f32[1,1,8], index: 4, kind: output, shape index: {}]
  %s5 = sld [smem:[#allocation0]]
  $region30: #{qmix_mixing_forward.1} parent=0
    _
  %s7 = ssub.s32 1, %s5
  %s8 = scalar_select 0, %s7, %s5
  $region1: #{qmix_mixing_forward.1} parent=0
    #allocation2 [shape = 'u8[65536]{0}', space=vmem, size = 0x10000, scoped, tag = 'input window, operand 2, single buffered']
    #allocation3 [shape = 's32[1]{0}', space=sflag, size = 0x4, scoped, tag = 'scoped memory for qmix_mixing_forward.1']
    #allocation4 [shape = 's32[1]{0}', space=sflag, size = 0x4, scoped, tag = 'scoped memory for qmix_mixing_forward.1']
    #allocation5 [shape = 'u8[512]{0}', space=vmem, size = 0x400, scoped, tag = 'output window, operand 0, single buffered']
    %9 = vsyncpa [#allocation3], 0
    %10 = vsyncpa [#allocation4], 0
    // Predicated region
    $region2: #{qmix_mixing_forward.1} parent=1 // pred_check
      _
    $region3: #{qmix_mixing_forward.1} parent=1 // pred_check_branch
      %12 = sbr.rel (0) target = $region5
    $region4: #{qmix_mixing_forward.1} parent=1 // pred_region
      _
    $region5: #{qmix_mixing_forward.1} parent=1 // pred_fallthru
      _
    // Predicated region
    $region6: #{qmix_mixing_forward.1} parent=1 // pred_check
      _
    $region7: #{qmix_mixing_forward.1} parent=1 // pred_check_branch
      %14 = sbr.rel (0) target = $region9
    $region8: #{qmix_mixing_forward.1} parent=1 // pred_region
      _
    $region9: #{qmix_mixing_forward.1} parent=1 // pred_fallthru
      _
    // Predicated region
    $region10: #{qmix_mixing_forward.1} parent=1 // pred_check
      _
    $region11: #{qmix_mixing_forward.1} parent=1 // pred_check_branch
      %16 = sbr.rel (0) target = $region13
    $region12: #{qmix_mixing_forward.1} parent=1 // pred_region
      %s18 = ssub.s32 2048, 2048
      %19 = vsyncadd [#allocation3], %s18
      %s20 = sshll.u32 [#allocation2], 4
      %s21 = int_to_ptr.vmem [resolvable:$true] %s20
      %26 = dma.hbm_to_vmem [thread:$0]  %s2, 2048, %s21, [#allocation3], 512, 512, 32
    $region13: #{qmix_mixing_forward.1} parent=1 // pred_fallthru
      _
    // Predicated region
    $region14: #{qmix_mixing_forward.1} parent=1 // pred_check
      _
    $region15: #{qmix_mixing_forward.1} parent=1 // pred_check_branch
      %28 = sbr.rel (0) target = $region17
    $region16: #{qmix_mixing_forward.1} parent=1 // pred_region
      _
    $region17: #{qmix_mixing_forward.1} parent=1 // pred_fallthru
      _
    // Predicated region
    $region18: #{qmix_mixing_forward.1} parent=1 // pred_check
      _
    $region19: #{qmix_mixing_forward.1} parent=1 // pred_check_branch
      %30 = sbr.rel (0) target = $region21
    $region20: #{qmix_mixing_forward.1} parent=1 // pred_region
      %31 = dma.done [#allocation3], 2048
    $region21: #{qmix_mixing_forward.1} parent=1 // pred_fallthru
      _
    %v32 = vld [vmem:[%s0] sm:$0xff]
    %v33 = vld [vmem:[#allocation2] sm:$0xff]
    %v34 = vld [vmem:[#allocation2 + $0x8] sm:$0xff]
    %v35 = vld [vmem:[#allocation2 + $0x10] sm:$0xff]
    %v36 = vld [vmem:[#allocation2 + $0x18] sm:$0xff]
    %v37 = vld [vmem:[#allocation2 + $0x20] sm:$0xff]
    %v38 = vld [vmem:[#allocation2 + $0x28] sm:$0xff]
    %v39 = vld [vmem:[#allocation2 + $0x30] sm:$0xff]
    %v40 = vld [vmem:[#allocation2 + $0x38] sm:$0xff]
    %v41 = vld [vmem:[#allocation2 + $0x40] sm:$0xff]
    %v42 = vld [vmem:[#allocation2 + $0x48] sm:$0xff]
    %v43 = vld [vmem:[#allocation2 + $0x50] sm:$0xff]
    %v44 = vld [vmem:[#allocation2 + $0x58] sm:$0xff]
    %v45 = vld [vmem:[#allocation2 + $0x60] sm:$0xff]
    %v46 = vld [vmem:[#allocation2 + $0x68] sm:$0xff]
    %v47 = vld [vmem:[#allocation2 + $0x70] sm:$0xff]
    %v48 = vld [vmem:[#allocation2 + $0x78] sm:$0xff]
    %v49 = vld [vmem:[%s3] sm:$0xf]
    %v51 = vlaneseq
    %v52 = vshrl.u32 %v51, 7
    %v53 = vsub.s32 0, %v52
    %v54 = vrot.slane %v49, %v53
    %v55 = vlaneseq
    %v56 = vshrl.u32 %v55, 7
    %v57 = vsub.s32 1, %v56
    %v58 = vrot.slane %v49, %v57
    %v59 = vlaneseq
    %v60 = vshrl.u32 %v59, 7
    %v61 = vsub.s32 2, %v60
    %v62 = vrot.slane %v49, %v61
    %v63 = vlaneseq
    %v64 = vshrl.u32 %v63, 7
    %v65 = vsub.s32 3, %v64
    %v66 = vrot.slane %v49, %v65
    %vm71 = vcmask 261120
    %v73 = vsel %vm71, %v32, 0
    %75 = vmatprep.subr.mxu0 %v34
    %76 = vmatpush1.msra.mxu0 %v33
    %77 = vmatprep.subr.mxu0 %v38
    %78 = vmatpush1.msra.mxu0 %v37
    %79 = vmatprep.subr.mxu0 %v42
    %80 = vmatpush1.msra.mxu0 %v41
    %81 = vmatprep.subr.mxu0 %v46
    %82 = vmatpush1.msra.mxu0 %v45
    %83 = vmatprep.subr.mxu0 0.0
    %84 = vmatpush1.msra.mxu0 0.0
    %85 = vmatprep.subr.mxu0 0.0
    %86 = vmatpush1.msra.mxu0 0.0
    %87 = vmatprep.subr.mxu0 0.0
    %88 = vmatpush1.msra.mxu0 0.0
    %89 = vmatprep.subr.mxu0 0.0
    %90 = vmatpush1.msra.mxu0 0.0
    %91 = vmatprep.subr.mxu0 0.0
    %92 = vmatpush1.msra.mxu0 0.0
    %93 = vmatprep.subr.mxu0 0.0
    %94 = vmatpush1.msra.mxu0 0.0
    %95 = vmatprep.subr.mxu0 0.0
    %96 = vmatpush1.msra.mxu0 0.0
    %97 = vmatprep.subr.mxu0 0.0
    %98 = vmatpush1.msra.mxu0 0.0
    %99 = vmatprep.subr.mxu0 0.0
    %100 = vmatpush1.msra.mxu0 0.0
    %101 = vmatprep.subr.mxu0 0.0
    %102 = vmatpush1.msra.mxu0 0.0
    %103 = vmatprep.subr.mxu0 0.0
    %104 = vmatpush1.msra.mxu0 0.0
    %105 = vmatprep.subr.mxu0 0.0
    %106 = vmatpush1.msra.mxu0 0.0
    %107 = vmatprep.subr.mxu0 0.0
    %108 = vmatpush1.msra.mxu0 0.0
    %109 = vmatprep.subr.mxu0 0.0
    %110 = vmatpush1.msra.mxu0 0.0
    %111 = vmatprep.subr.mxu0 0.0
    %112 = vmatpush1.msra.mxu0 0.0
    %113 = vmatprep.subr.mxu0 0.0
    %114 = vmatpush1.msra.mxu0 0.0
    %115 = vmatprep.subr.mxu0 0.0
    %116 = vmatpush1.msra.mxu0 0.0
    %117 = vmatprep.subr.mxu0 0.0
    %118 = vmatpush1.msra.mxu0 0.0
    %119 = vmatprep.subr.mxu0 0.0
    %120 = vmatpush1.msra.mxu0 0.0
    %121 = vmatprep.subr.mxu0 0.0
    %122 = vmatpush1.msra.mxu0 0.0
    %123 = vmatprep.subr.mxu0 0.0
    %124 = vmatpush1.msra.mxu0 0.0
    %125 = vmatprep.subr.mxu0 0.0
    %126 = vmatpush1.msra.mxu0 0.0
    %127 = vmatprep.subr.mxu0 0.0
    %128 = vmatpush1.msra.mxu0 0.0
    %129 = vmatprep.subr.mxu0 0.0
    %130 = vmatpush1.msra.mxu0 0.0
    %131 = vmatprep.subr.mxu0 0.0
    %132 = vmatpush1.msra.mxu0 0.0
    %133 = vmatprep.subr.mxu0 0.0
    %134 = vmatpush1.msra.mxu0 0.0
    %135 = vmatprep.subr.mxu0 0.0
    %136 = vmatpush1.msra.mxu0 0.0
    %137 = vmatprep.subr.mxu0 0.0
    %138 = vmatpush1.msra.mxu0 0.0
    %139 = vmatprep.mubr.f32.mxu0 0.0
    %140 = vmatmul.mubr.f32.gmra.mrb[0].mxu0 %v73
    %v141 = vpop.f32.mrb[0].mxu0
    %v142 = vadd.f32 %v54, %v141
    %v143 = vpop.f32.mrb[0].mxu0
    %v144 = vadd.f32 %v58, %v143
    %145 = vdwg.mxu0
    %146 = vmatprep.subr.mxu0 %v36
    %147 = vmatpush1.msra.mxu0 %v35
    %148 = vmatprep.subr.mxu0 %v40
    %149 = vmatpush1.msra.mxu0 %v39
    %150 = vmatprep.subr.mxu0 %v44
    %151 = vmatpush1.msra.mxu0 %v43
    %152 = vmatprep.subr.mxu0 %v48
    %153 = vmatpush1.msra.mxu0 %v47
    %154 = vmatprep.subr.mxu0 0.0
    %155 = vmatpush1.msra.mxu0 0.0
    %156 = vmatprep.subr.mxu0 0.0
    %157 = vmatpush1.msra.mxu0 0.0
    %158 = vmatprep.subr.mxu0 0.0
    %159 = vmatpush1.msra.mxu0 0.0
    %160 = vmatprep.subr.mxu0 0.0
    %161 = vmatpush1.msra.mxu0 0.0
    %162 = vmatprep.subr.mxu0 0.0
    %163 = vmatpush1.msra.mxu0 0.0
    %164 = vmatprep.subr.mxu0 0.0
    %165 = vmatpush1.msra.mxu0 0.0
    %166 = vmatprep.subr.mxu0 0.0
    %167 = vmatpush1.msra.mxu0 0.0
    %168 = vmatprep.subr.mxu0 0.0
    %169 = vmatpush1.msra.mxu0 0.0
    %170 = vmatprep.subr.mxu0 0.0
    %171 = vmatpush1.msra.mxu0 0.0
    %172 = vmatprep.subr.mxu0 0.0
    %173 = vmatpush1.msra.mxu0 0.0
    %174 = vmatprep.subr.mxu0 0.0
    %175 = vmatpush1.msra.mxu0 0.0
    %176 = vmatprep.subr.mxu0 0.0
    %177 = vmatpush1.msra.mxu0 0.0
    %178 = vmatprep.subr.mxu0 0.0
    %179 = vmatpush1.msra.mxu0 0.0
    %180 = vmatprep.subr.mxu0 0.0
    %181 = vmatpush1.msra.mxu0 0.0
    %182 = vmatprep.subr.mxu0 0.0
    %183 = vmatpush1.msra.mxu0 0.0
    %184 = vmatprep.subr.mxu0 0.0
    %185 = vmatpush1.msra.mxu0 0.0
    %186 = vmatprep.subr.mxu0 0.0
    %187 = vmatpush1.msra.mxu0 0.0
    %188 = vmatprep.subr.mxu0 0.0
    %189 = vmatpush1.msra.mxu0 0.0
    %190 = vmatprep.subr.mxu0 0.0
    %191 = vmatpush1.msra.mxu0 0.0
    %192 = vmatprep.subr.mxu0 0.0
    %193 = vmatpush1.msra.mxu0 0.0
    %194 = vmatprep.subr.mxu0 0.0
    %195 = vmatpush1.msra.mxu0 0.0
    %196 = vmatprep.subr.mxu0 0.0
    %197 = vmatpush1.msra.mxu0 0.0
    %198 = vmatprep.subr.mxu0 0.0
    %199 = vmatpush1.msra.mxu0 0.0
    %200 = vmatprep.subr.mxu0 0.0
    %201 = vmatpush1.msra.mxu0 0.0
    %202 = vmatprep.subr.mxu0 0.0
    %203 = vmatpush1.msra.mxu0 0.0
    %204 = vmatprep.subr.mxu0 0.0
    %205 = vmatpush1.msra.mxu0 0.0
    %206 = vmatprep.subr.mxu0 0.0
    %207 = vmatpush1.msra.mxu0 0.0
    %208 = vmatprep.subr.mxu0 0.0
    %209 = vmatpush1.msra.mxu0 0.0
    %210 = vmatprep.mubr.f32.mxu0 0.0
    %211 = vmatmul.mubr.f32.gmra.mrb[0].mxu0 %v73
    %v212 = vpop.f32.mrb[0].mxu0
    %v213 = vadd.f32 %v62, %v212
    %v214 = vpop.f32.mrb[0].mxu0
    %v215 = vadd.f32 %v66, %v214
    %216 = vdwg.mxu0
    %v217 = vld [vmem:[%s1] sm:$0xff]
    %v218 = vlaneseq
    %v219 = vand.u32 %v218, 127
    %vm220 = vcmp.lt.s32.totalorder %v219, 64
    %v221 = vsel %vm220, 1, 0
    %vm222 = vcmp.eq.s32.totalorder %v221, 1
    %224 = vset.pattern.permute.xlu0 0
    %225 = vperm.xlu0 %224, %v217
    %v226 = vpop.permute.xlu0 %225
    %228 = vset.pattern.permute.xlu0 1
    %229 = vperm.xlu0 %228, %v217
    %v230 = vpop.permute.xlu0 %229
    %v232 = vsel %vm222, %v226, %v230
    %v233 = vand.u32 2147483647, %v142
    %v234 = vmul.f32 %v232, %v233
    %235 = vset.pattern.permute.xlu0 2
    %236 = vperm.xlu0 %235, %v217
    %v237 = vpop.permute.xlu0 %236
    %239 = vset.pattern.permute.xlu0 3
    %240 = vperm.xlu0 %239, %v217
    %v241 = vpop.permute.xlu0 %240
    %v243 = vsel %vm222, %v237, %v241
    %v244 = vand.u32 2147483647, %v144
    %v245 = vmul.f32 %v243, %v244
    %v246 = vadd.f32 %v234, %v245
    %247 = vrot.lane.b32.xlu0 %v246, 64
    %v248 = vpop.permute.xlu0 %247
    %v249 = vadd.f32 %v246, %v248
    %v250 = vadd.f32 %v249, %v215
    %v251 = vand.u32 2147483647, %v213
    %v252 = vsel %vm222, 0.0, %v251
    %v253 = vmul.f32 %v250, %v252
    %254 = vadd.xlane.f32.xlu0 %v253
    %v255 = vpop.xlane.xlu0 %254
    %v256 = vadd.f32 %v255, %v215
    %258 = vset.pattern.permute.xlu0 0
    %259 = vperm.xlu0 %258, %v256
    %v260 = vpop.permute.xlu0 %259
    %v261 = vlaneseq
    %v262 = vshrl.u32 %v261, 7
    %v263 = vsub.s32 %v219, %v262
    %v264 = vrot.slane %v260, %v263
    %vm266 = vcmask 57344
    %267 = vst.msk [vmem:[#allocation5] sm:$0x1] %vm266, %v264
    // Predicated region
    $region22: #{qmix_mixing_forward.1} parent=1 // pred_check
      _
    $region23: #{qmix_mixing_forward.1} parent=1 // pred_check_branch
      %269 = sbr.rel (0) target = $region25
    $region24: #{qmix_mixing_forward.1} parent=1 // pred_region
      %s271 = ssub.s32 16, 16
      %272 = vsyncadd [#allocation4], %s271
      %s274 = sshll.u32 [#allocation5], 4
      %s275 = int_to_ptr.vmem [resolvable:$true] %s274
      %277 = dma.vmem_to_hbm [thread:$0]  %s275, 16, %s4, [#allocation4]
    $region25: #{qmix_mixing_forward.1} parent=1 // pred_fallthru
      _
    // Predicated region
    $region26: #{qmix_mixing_forward.1} parent=1 // pred_check
      _
    $region27: #{qmix_mixing_forward.1} parent=1 // pred_check_branch
      %279 = sbr.rel (0) target = $region29
    $region28: #{qmix_mixing_forward.1} parent=1 // pred_region
      %280 = dma.done [#allocation4], 16
    $region29: #{qmix_mixing_forward.1} parent=1 // pred_fallthru
      _
    %281 = vsyncpa [#allocation3], 1
    %282 = vsyncpa [#allocation4], 1

</llo_original>
